<compile_context>
chip_gen: v6e
topology: v6e:2x2x1
jax: 0.10.0
libtpu: 0.0.40
codegen_flags: <defaults>
</compile_context>

<pallas_src>
import functools

import jax
import jax.numpy as jnp
import numpy as np
from jax import lax
from jax.experimental import pallas as pl
from jax.experimental.pallas import tpu as pltpu


def conv_block_kernel(x_ref, w_ref, b_ref, m_ref, o_ref, *, H, W, KH, KW, ph, pw):
    # x_ref: (1, Cin, H*W)       one batch element, NCHW with H*W flattened (lane axis)
    # w_ref: (Cout, KH*KW*Cin)   contraction ordering (dh, dw, cin)
    # b_ref: (Cout, 1)
    # m_ref: (KH*KW*Cin, H*W)    0/1 validity mask per patch row (encodes zero padding)
    # o_ref: (1, Cout, H*W)
    HW = H * W
    x = x_ref[0]                                           # (Cin, HW)

    # --- im2col patch matrix: one static lane-rotate per tap, masked once ---
    taps = []
    for dh in range(KH):
        for dw in range(KW):
            d = (dh - ph) * W + (dw - pw)                  # flat offset of this tap
            taps.append(x if d == 0 else pltpu.roll(x, shift=(-d) % HW, axis=1))
    patches = jnp.concatenate(taps, axis=0) * m_ref[...]   # (KH*KW*Cin, HW)

    # --- single K = KH*KW*Cin matmul on the MXU (channels-first, lane-dense) ---
    acc = jnp.dot(w_ref[...], patches, preferred_element_type=jnp.float32)
    acc = acc + b_ref[...]                                 # (Cout, HW)

    # --- ELU (alpha = 1.0); clamp before exp so the dead branch never hits inf ---
    y = jnp.where(acc > 0, acc, jnp.exp(jnp.minimum(acc, 0.0)) - 1.0)

    # --- InstanceNorm2d (affine=False, eps=1e-5): per-channel stats over H*W ---
    # Two-pass (y - mean)**2 kept for numerical safety; tile stays VMEM-resident.
    mean = jnp.mean(y, axis=1, keepdims=True)              # (Cout, 1)
    var = jnp.mean(jnp.square(y - mean), axis=1, keepdims=True)
    o_ref[...] = ((y - mean) * lax.rsqrt(var + 1e-5))[None].astype(o_ref.dtype)


@jax.jit
def conv2d_block(x_nchw, w_oihw, bias):
    """Conv2d(stride=1, padding=1) + ELU + InstanceNorm2d, matching the PyTorch module."""
    N, Cin, H, W = x_nchw.shape
    Cout, _, KH, KW = w_oihw.shape
    ph, pw = (KH - 1) // 2, (KW - 1) // 2
    HW = H * W
    K = KH * KW * Cin

    # NCHW is already the kernel layout: just flatten H*W (free bitcast, no transpose).
    x_flat = x_nchw.reshape(N, Cin, HW).astype(jnp.float32)
    # (Cout, Cin, KH, KW) -> (Cout, KH, KW, Cin) -> (Cout, K); tiny, done once.
    w_mat = jnp.transpose(w_oihw, (0, 2, 3, 1)).reshape(Cout, K).astype(jnp.float32)
    b_col = bias.reshape(Cout, 1).astype(jnp.float32)

    # Precompute the 0/1 validity mask per (tap, cin) patch row: it encodes the
    # zero padding, so the kernel needs no jnp.pad and no vector integer div/mod.
    rr = np.repeat(np.arange(H), W)
    cc = np.tile(np.arange(W), H)
    tap_masks = []
    for dh in range(KH):
        for dw in range(KW):
            oh, ow = dh - ph, dw - pw
            tap_masks.append((rr + oh >= 0) & (rr + oh < H) &
                             (cc + ow >= 0) & (cc + ow < W))
    mask = jnp.asarray(np.repeat(np.stack(tap_masks), Cin, axis=0)
                       .astype(np.float32))                 # (K, HW)

    kernel = functools.partial(conv_block_kernel,
                               H=H, W=W, KH=KH, KW=KW, ph=ph, pw=pw)

    out_flat = pl.pallas_call(
        kernel,
        out_shape=jax.ShapeDtypeStruct((N, Cout, HW), jnp.float32),
        grid_spec=pltpu.PrefetchScalarGridSpec(
            num_scalar_prefetch=0,
            grid=(N,),
            in_specs=[
                pl.BlockSpec((1, Cin, HW), lambda n: (n, 0, 0)),
                pl.BlockSpec((Cout, K), lambda n: (0, 0)),
                pl.BlockSpec((Cout, 1), lambda n: (0, 0)),
                pl.BlockSpec((K, HW), lambda n: (0, 0)),
            ],
            out_specs=pl.BlockSpec((1, Cout, HW), lambda n: (n, 0, 0)),
        ),
        compiler_params=pltpu.CompilerParams(
            dimension_semantics=("parallel",)),
    )(x_flat, w_mat, b_col, mask)

    # Free reshape back to the PyTorch NCHW output convention (no transpose).
    # TODO(synk): for large H/W/C on v7x (64 MiB VMEM) add an H-tiling grid axis with
    # halo rows and a sum/sumsq accumulator for the InstanceNorm statistics.
    return out_flat.reshape(N, Cout, H, W)


def _reference(x_nchw, w_oihw, bias):
    """Pure-JAX reference matching nn.Conv2d + ELU + InstanceNorm2d."""
    conv = lax.conv_general_dilated(
        x_nchw.astype(jnp.float32), w_oihw.astype(jnp.float32),
        window_strides=(1, 1), padding=((1, 1), (1, 1)),
        dimension_numbers=("NCHW", "OIHW", "NCHW"))
    conv = conv + bias.reshape(1, -1, 1, 1)
    y = jax.nn.elu(conv)
    mean = jnp.mean(y, axis=(2, 3), keepdims=True)
    var = jnp.mean((y - mean) ** 2, axis=(2, 3), keepdims=True)
    return (y - mean) * lax.rsqrt(var + 1e-5)


if __name__ == "__main__":
    # Module defaults: in_dims=16, out_dims=32, kernel=(3,3), stride=(1,1), padding=(1,1)
    N, Cin, Cout, H, W, KH, KW = 2, 16, 32, 16, 16, 3, 3

    key = jax.random.PRNGKey(0)
    kx, kw, kb = jax.random.split(key, 3)
    x = jax.random.normal(kx, (N, Cin, H, W), dtype=jnp.float32)
    fan_in = Cin * KH * KW
    bound = 1.0 / np.sqrt(fan_in)
    w = jax.random.uniform(kw, (Cout, Cin, KH, KW), jnp.float32, -bound, bound)
    b = jax.random.uniform(kb, (Cout,), jnp.float32, -bound, bound)

    out = jax.block_until_ready(conv2d_block(x, w, b))
    ref = jax.block_until_ready(_reference(x, w, b))

    assert out.shape == (N, Cout, H, W)
    np.testing.assert_allclose(np.asarray(out), np.asarray(ref), rtol=1e-4, atol=1e-4)
    print("KERNEL_OK")
</pallas_src>

<mosaic_0001>
module attributes {stable_mosaic.version = 11 : i64} {
  func.func @conv_block_kernel(%arg0: i32, %arg1: memref<1x16x256xf32, #tpu.memory_space<vmem>>, %arg2: memref<32x144xf32, #tpu.memory_space<vmem>>, %arg3: memref<32x1xf32, #tpu.memory_space<vmem>>, %arg4: memref<144x256xf32, #tpu.memory_space<vmem>>, %arg5: memref<1x32x256xf32, #tpu.memory_space<vmem>>) attributes {dimension_semantics = [#tpu.dimension_semantics<parallel>], iteration_bounds = array<i64: 2>, scalar_prefetch = 0 : i64, scratch_operands = 0 : i64, tpu.core_type = #tpu.core_type<tc>, window_params = [{transform_indices = @transform_0, window_bounds = array<i64: 1, 16, 256>}, {pipeline_mode = #tpu.pipeline_mode<synchronous>, transform_indices = @transform_1, window_bounds = array<i64: 32, 144>}, {pipeline_mode = #tpu.pipeline_mode<synchronous>, transform_indices = @transform_2, window_bounds = array<i64: 32, 1>}, {pipeline_mode = #tpu.pipeline_mode<synchronous>, transform_indices = @transform_3, window_bounds = array<i64: 144, 256>}, {transform_indices = @transform_4, window_bounds = array<i64: 1, 32, 256>}]} {
    %c0 = arith.constant 0 : index
    %c0_0 = arith.constant 0 : index
    %c0_1 = arith.constant 0 : index
    %0 = vector.load %arg1[%c0, %c0_0, %c0_1] : memref<1x16x256xf32, #tpu.memory_space<vmem>>, vector<1x16x256xf32>
    %1 = vector.shape_cast %0 : vector<1x16x256xf32> to vector<16x256xf32>
    %c17_i32 = arith.constant 17 : i32
    %2 = tpu.dynamic_rotate %1 by %c17_i32 dim 1 : vector<16x256xf32>, i32 -> vector<16x256xf32>
    %c16_i32 = arith.constant 16 : i32
    %3 = tpu.dynamic_rotate %1 by %c16_i32 dim 1 : vector<16x256xf32>, i32 -> vector<16x256xf32>
    %c15_i32 = arith.constant 15 : i32
    %4 = tpu.dynamic_rotate %1 by %c15_i32 dim 1 : vector<16x256xf32>, i32 -> vector<16x256xf32>
    %c1_i32 = arith.constant 1 : i32
    %5 = tpu.dynamic_rotate %1 by %c1_i32 dim 1 : vector<16x256xf32>, i32 -> vector<16x256xf32>
    %c255_i32 = arith.constant 255 : i32
    %6 = tpu.dynamic_rotate %1 by %c255_i32 dim 1 : vector<16x256xf32>, i32 -> vector<16x256xf32>
    %c241_i32 = arith.constant 241 : i32
    %7 = tpu.dynamic_rotate %1 by %c241_i32 dim 1 : vector<16x256xf32>, i32 -> vector<16x256xf32>
    %c240_i32 = arith.constant 240 : i32
    %8 = tpu.dynamic_rotate %1 by %c240_i32 dim 1 : vector<16x256xf32>, i32 -> vector<16x256xf32>
    %c239_i32 = arith.constant 239 : i32
    %9 = tpu.dynamic_rotate %1 by %c239_i32 dim 1 : vector<16x256xf32>, i32 -> vector<16x256xf32>
    %10 = tpu.concatenate %2, %3, %4, %5, %1, %6, %7, %8, %9 in 0 : vector<16x256xf32>, vector<16x256xf32>, vector<16x256xf32>, vector<16x256xf32>, vector<16x256xf32>, vector<16x256xf32>, vector<16x256xf32>, vector<16x256xf32>, vector<16x256xf32> -> vector<144x256xf32>
    %c0_2 = arith.constant 0 : index
    %c0_3 = arith.constant 0 : index
    %11 = vector.load %arg4[%c0_2, %c0_3] : memref<144x256xf32, #tpu.memory_space<vmem>>, vector<144x256xf32>
    %12 = arith.mulf %10, %11 : vector<144x256xf32>
    %c0_4 = arith.constant 0 : index
    %c0_5 = arith.constant 0 : index
    %13 = vector.load %arg2[%c0_4, %c0_5] : memref<32x144xf32, #tpu.memory_space<vmem>>, vector<32x144xf32>
    %cst = arith.constant dense<0.000000e+00> : vector<32x256xf32>
    %14 = tpu.matmul %13, %12, %cst {dimension_numbers = #tpu.dot_dimension_numbers<[1], [0], [0], [1], [0, 0, 1, 1], [], []>} : vector<32x144xf32>, vector<144x256xf32>, vector<32x256xf32> -> vector<32x256xf32>
    %c0_6 = arith.constant 0 : index
    %c0_7 = arith.constant 0 : index
    %15 = vector.load %arg3[%c0_6, %c0_7] : memref<32x1xf32, #tpu.memory_space<vmem>>, vector<32x1xf32>
    %16 = vector.broadcast %15 : vector<32x1xf32> to vector<32x256xf32>
    %17 = arith.addf %14, %16 : vector<32x256xf32>
    %cst_8 = arith.constant 0.000000e+00 : f32
    %18 = vector.broadcast %cst_8 : f32 to vector<32x256xf32>
    %19 = arith.cmpf ogt, %17, %18 : vector<32x256xf32>
    %cst_9 = arith.constant 0.000000e+00 : f32
    %20 = vector.broadcast %cst_9 : f32 to vector<32x256xf32>
    %21 = arith.minimumf %17, %20 : vector<32x256xf32>
    %22 = math.exp %21 : vector<32x256xf32>
    %cst_10 = arith.constant 1.000000e+00 : f32
    %23 = vector.broadcast %cst_10 : f32 to vector<32x256xf32>
    %24 = arith.subf %22, %23 : vector<32x256xf32>
    %25 = arith.select %19, %17, %24 : vector<32x256xi1>, vector<32x256xf32>
    %cst_11 = arith.constant dense<0.000000e+00> : vector<32xf32>
    %26 = vector.multi_reduction <add>, %25, %cst_11 [1] : vector<32x256xf32> to vector<32xf32>
    %27 = vector.shape_cast %26 : vector<32xf32> to vector<32x1xf32>
    %cst_12 = arith.constant 2.560000e+02 : f32
    %28 = vector.broadcast %cst_12 : f32 to vector<32x1xf32>
    %29 = arith.divf %27, %28 : vector<32x1xf32>
    %30 = vector.broadcast %29 : vector<32x1xf32> to vector<32x256xf32>
    %31 = arith.subf %25, %30 : vector<32x256xf32>
    %32 = arith.mulf %31, %31 : vector<32x256xf32>
    %cst_13 = arith.constant dense<0.000000e+00> : vector<32xf32>
    %33 = vector.multi_reduction <add>, %32, %cst_13 [1] : vector<32x256xf32> to vector<32xf32>
    %34 = vector.shape_cast %33 : vector<32xf32> to vector<32x1xf32>
    %cst_14 = arith.constant 2.560000e+02 : f32
    %35 = vector.broadcast %cst_14 : f32 to vector<32x1xf32>
    %36 = arith.divf %34, %35 : vector<32x1xf32>
    %37 = vector.broadcast %29 : vector<32x1xf32> to vector<32x256xf32>
    %38 = arith.subf %25, %37 : vector<32x256xf32>
    %cst_15 = arith.constant 9.99999974E-6 : f32
    %39 = vector.broadcast %cst_15 : f32 to vector<32x1xf32>
    %40 = arith.addf %36, %39 : vector<32x1xf32>
    %41 = math.rsqrt %40 : vector<32x1xf32>
    %42 = vector.broadcast %41 : vector<32x1xf32> to vector<32x256xf32>
    %43 = arith.mulf %38, %42 : vector<32x256xf32>
    %44 = vector.shape_cast %43 : vector<32x256xf32> to vector<1x32x256xf32>
    %c0_16 = arith.constant 0 : index
    %c0_17 = arith.constant 0 : index
    %c0_18 = arith.constant 0 : index
    %45 = vector.load %arg5[%c0_16, %c0_17, %c0_18] : memref<1x32x256xf32, #tpu.memory_space<vmem>>, vector<1x32x256xf32>
    tpu.vector_store %arg5[%c0_16, %c0_17, %c0_18], %44 {strides = array<i32>} : memref<1x32x256xf32, #tpu.memory_space<vmem>>, vector<1x32x256xf32>,
    return
  }
  func.func @transform_0(%arg0: i32) -> (i32, i32, i32) {
    %c0_i32 = arith.constant 0 : i32
    %c0_i32_0 = arith.constant 0 : i32
    %c0_i32_1 = arith.constant 0 : i32
    return %arg0, %c0_i32, %c0_i32_0 : i32, i32, i32
  }
  func.func @transform_1(%arg0: i32) -> (i32, i32) {
    %c0_i32 = arith.constant 0 : i32
    %c0_i32_0 = arith.constant 0 : i32
    %c0_i32_1 = arith.constant 0 : i32
    return %c0_i32, %c0_i32_0 : i32, i32
  }
  func.func @transform_2(%arg0: i32) -> (i32, i32) {
    %c0_i32 = arith.constant 0 : i32
    %c0_i32_0 = arith.constant 0 : i32
    %c0_i32_1 = arith.constant 0 : i32
    return %c0_i32, %c0_i32_0 : i32, i32
  }
  func.func @transform_3(%arg0: i32) -> (i32, i32) {
    %c0_i32 = arith.constant 0 : i32
    %c0_i32_0 = arith.constant 0 : i32
    %c0_i32_1 = arith.constant 0 : i32
    return %c0_i32, %c0_i32_0 : i32, i32
  }
  func.func @transform_4(%arg0: i32) -> (i32, i32, i32) {
    %c0_i32 = arith.constant 0 : i32
    %c0_i32_0 = arith.constant 0 : i32
    %c0_i32_1 = arith.constant 0 : i32
    return %arg0, %c0_i32, %c0_i32_0 : i32, i32, i32
  }
}

</mosaic_0001>

<llo_original>
// kernel: conv2d_block.1
$region0: #{conv2d_block.1}
  #allocation0 [shape = 'u32[]', space=smem, size = 0x4, offset = 0x4, fixed_abs, tag = 'smem constant byte address 0x4 - core index']
  #allocation1 [shape = 'u32[144,128]{1,0:T(1,128)}', space=vmem, size = 0x12000, scoped, tag = 'internal scratch']
  %s0 = inlined_call_operand.vmem [shape: f32[2,16,256], index: 0, kind: input, shape index: {}]
  %s1 = inlined_call_operand.vmem [shape: f32[32,144], index: 1, kind: input, shape index: {}]
  %s2 = inlined_call_operand.vmem [shape: f32[32,1], index: 2, kind: input, shape index: {}]
  %s3 = inlined_call_operand.vmem [shape: f32[144,256], index: 3, kind: input, shape index: {}]
  %s4 = inlined_call_operand.vmem [shape: f32[2,32,256], index: 4, kind: output, shape index: {}]
  %s5 = sld [smem:[#allocation0]]
  $region49: #{conv2d_block.1} parent=0
    _
  %s7 = ssub.s32 1, %s5
  %s8 = scalar_select 0, %s7, %s5
  loop: start=0, step=1, limit=4
  $region2: #{conv2d_block.1} parent=0 // loop_pre_header
    _
  $region3: #{conv2d_block.1} parent=0 // loop_header
    %s10 = sphi 0, %s14
    %p11 = scmp.ge.s32.totalorder %s10, 4
    %s20 = sphi 0, %s22
    %s23 = sphi 0, %s20
    %s24 = sphi 0, %s23
    %s40 = sphi 0, %s24
    %s44 = sphi 0, %s44
    %s46 = sphi 0, %s44
    %s47 = sphi 0, %s46
    %s61 = sphi 0, %s47
    %s65 = sphi 0, %s65
    %s67 = sphi 0, %s65
    %s68 = sphi 0, %s67
    %s82 = sphi 0, %s68
    %s86 = sphi 0, %s86
    %s88 = sphi 0, %s86
    %s89 = sphi 0, %s88
    %s103 = sphi 0, %s89
    %s109 = sphi 0, %s111
    %s112 = sphi 0, %s109
    %s113 = sphi 0, %s112
    %s129 = sphi 0, %s113
  $region4: #{conv2d_block.1} parent=0 // loop_header_branch
    %13 = sbr.rel (%p11) target = $region8
  $region5: #{conv2d_block.1} parent=0 // loop_body
    %s15 = ssub.s32 %s10, 1
    %s16 = ssub.s32 %s10, 2
    %s17 = sadd.s32 %s10, 1
    %s18 = ssub.s32 %s10, %s17
    %p19 = scmp.eq.s32.totalorder %s18, 0
    %s21 = sadd.s32 %s20, 1
    %s22 = scalar_select %p19, %s20, %s21
    %p25 = pneg %p19
    %p26 = scmp.eq.s32.totalorder %s10, 1
    %p27 = por %p25, %p26
    %p28 = scmp.ne.s32.totalorder %s20, %s23
    %p29 = scmp.eq.s32.totalorder %s10, 0
    %p30 = por %p28, %p29
    %p31 = scmp.ne.s32.totalorder %s20, %s23
    %p32 = scmp.eq.s32.totalorder %s15, 1
    %p33 = por %p31, %p32
    %p34 = scmp.ne.s32.totalorder %s23, %s24
    %p35 = scmp.eq.s32.totalorder %s15, 0
    %p36 = por %p34, %p35
    %p37 = scmp.ne.s32.totalorder %s23, %s24
    %p38 = scmp.eq.s32.totalorder %s16, 1
    %p39 = por %p37, %p38
    %p41 = scmp.ne.s32.totalorder %s24, %s40
    %p42 = scmp.eq.s32.totalorder %s16, 0
    %p43 = por %p41, %p42
    %s45 = sadd.s32 %s44, 1
    %p48 = scmp.eq.s32.totalorder %s10, 1
    %p49 = scmp.ne.s32.totalorder %s44, %s46
    %p50 = scmp.eq.s32.totalorder %s10, 0
    %p51 = por %p49, %p50
    %p52 = scmp.ne.s32.totalorder %s44, %s46
    %p53 = scmp.eq.s32.totalorder %s15, 1
    %p54 = por %p52, %p53
    %p55 = scmp.ne.s32.totalorder %s46, %s47
    %p56 = scmp.eq.s32.totalorder %s15, 0
    %p57 = por %p55, %p56
    %p58 = scmp.ne.s32.totalorder %s46, %s47
    %p59 = scmp.eq.s32.totalorder %s16, 1
    %p60 = por %p58, %p59
    %p62 = scmp.ne.s32.totalorder %s47, %s61
    %p63 = scmp.eq.s32.totalorder %s16, 0
    %p64 = por %p62, %p63
    %s66 = sadd.s32 %s65, 1
    %p69 = scmp.eq.s32.totalorder %s10, 1
    %p70 = scmp.ne.s32.totalorder %s65, %s67
    %p71 = scmp.eq.s32.totalorder %s10, 0
    %p72 = por %p70, %p71
    %p73 = scmp.ne.s32.totalorder %s65, %s67
    %p74 = scmp.eq.s32.totalorder %s15, 1
    %p75 = por %p73, %p74
    %p76 = scmp.ne.s32.totalorder %s67, %s68
    %p77 = scmp.eq.s32.totalorder %s15, 0
    %p78 = por %p76, %p77
    %p79 = scmp.ne.s32.totalorder %s67, %s68
    %p80 = scmp.eq.s32.totalorder %s16, 1
    %p81 = por %p79, %p80
    %p83 = scmp.ne.s32.totalorder %s68, %s82
    %p84 = scmp.eq.s32.totalorder %s16, 0
    %p85 = por %p83, %p84
    %s87 = sadd.s32 %s86, 1
    %p90 = scmp.eq.s32.totalorder %s10, 1
    %p91 = scmp.ne.s32.totalorder %s86, %s88
    %p92 = scmp.eq.s32.totalorder %s10, 0
    %p93 = por %p91, %p92
    %p94 = scmp.ne.s32.totalorder %s86, %s88
    %p95 = scmp.eq.s32.totalorder %s15, 1
    %p96 = por %p94, %p95
    %p97 = scmp.ne.s32.totalorder %s88, %s89
    %p98 = scmp.eq.s32.totalorder %s15, 0
    %p99 = por %p97, %p98
    %p100 = scmp.ne.s32.totalorder %s88, %s89
    %p101 = scmp.eq.s32.totalorder %s16, 1
    %p102 = por %p100, %p101
    %p104 = scmp.ne.s32.totalorder %s89, %s103
    %p105 = scmp.eq.s32.totalorder %s16, 0
    %p106 = por %p104, %p105
    %s107 = ssub.s32 %s10, %s17
    %p108 = scmp.eq.s32.totalorder %s107, 0
    %s110 = sadd.s32 %s109, 1
    %s111 = scalar_select %p108, %s109, %s110
    %p114 = pneg %p108
    %p115 = scmp.eq.s32.totalorder %s10, 1
    %p116 = por %p114, %p115
    %p117 = scmp.ne.s32.totalorder %s109, %s112
    %p118 = scmp.eq.s32.totalorder %s10, 0
    %p119 = por %p117, %p118
    %p120 = scmp.ne.s32.totalorder %s109, %s112
    %p121 = scmp.eq.s32.totalorder %s15, 1
    %p122 = por %p120, %p121
    %p123 = scmp.ne.s32.totalorder %s112, %s113
    %p124 = scmp.eq.s32.totalorder %s15, 0
    %p125 = por %p123, %p124
    %p126 = scmp.ne.s32.totalorder %s112, %s113
    %p127 = scmp.eq.s32.totalorder %s16, 1
    %p128 = por %p126, %p127
    %p130 = scmp.ne.s32.totalorder %s113, %s129
    %p131 = scmp.eq.s32.totalorder %s16, 0
    %p132 = por %p130, %p131
    %p133 = scmp.le.s32.totalorder 1, %s10
    %p134 = scmp.lt.s32.totalorder %s10, 3
    %p135 = pnand %p133, %p134
    %p136 = pneg %p135
    // Predicated region
    $region9: #{conv2d_block.1} parent=5 // pred_check
      _
    $region10: #{conv2d_block.1} parent=5 // pred_check_branch
      %138 = sbr.rel (%p135) target = $region12
    $region11: #{conv2d_block.1} parent=5 // pred_region
      %s139 = ssub.s32 %s10, 1
      // Predicated region
      $region13: #{conv2d_block.1} parent=11 // pred_check
        %p140 = pneg %p57
      $region14: #{conv2d_block.1} parent=11 // pred_check_branch
        %142 = sbr.rel (%p140) target = $region16
      $region15: #{conv2d_block.1} parent=11 // pred_region
        _
      $region16: #{conv2d_block.1} parent=11 // pred_fallthru
        _
      // Predicated region
      $region17: #{conv2d_block.1} parent=11 // pred_check
        %p143 = pneg %p78
      $region18: #{conv2d_block.1} parent=11 // pred_check_branch
        %145 = sbr.rel (%p143) target = $region20
      $region19: #{conv2d_block.1} parent=11 // pred_region
        _
      $region20: #{conv2d_block.1} parent=11 // pred_fallthru
        _
      // Predicated region
      $region21: #{conv2d_block.1} parent=11 // pred_check
        %p146 = pneg %p99
      $region22: #{conv2d_block.1} parent=11 // pred_check_branch
        %148 = sbr.rel (%p146) target = $region24
      $region23: #{conv2d_block.1} parent=11 // pred_region
        _
      $region24: #{conv2d_block.1} parent=11 // pred_fallthru
        _
    $region12: #{conv2d_block.1} parent=5 // pred_fallthru
      _
    %p149 = scmp.lt.s32.totalorder %s10, 2
    // Predicated region
    $region25: #{conv2d_block.1} parent=5 // pred_check
      %p150 = pneg %p149
    $region26: #{conv2d_block.1} parent=5 // pred_check_branch
      %152 = sbr.rel (%p150) target = $region28
    $region27: #{conv2d_block.1} parent=5 // pred_region
      // Predicated region
      $region29: #{conv2d_block.1} parent=27 // pred_check
        %p153 = pneg %p30
      $region30: #{conv2d_block.1} parent=27 // pred_check_branch
        %155 = sbr.rel (%p153) target = $region32
      $region31: #{conv2d_block.1} parent=27 // pred_region
        %p156 = scmp.lt.s32.totalorder %s10, 1
        %s157 = scalar_select %p156, %s10, 1
        %s158 = smul.addr %s157, 4
        %s159 = smul.addr %s158, 8
        %s160 = scalar_lea.vmem %s0, %s159
      $region32: #{conv2d_block.1} parent=27 // pred_fallthru
        _
    $region28: #{conv2d_block.1} parent=5 // pred_fallthru
      _
    %p161 = scmp.le.s32.totalorder 1, %s10
    %p162 = scmp.lt.s32.totalorder %s10, 3
    %p163 = pnand %p161, %p162
    %p164 = pneg %p163
    // Predicated region
    $region33: #{conv2d_block.1} parent=5 // pred_check
      _
    $region34: #{conv2d_block.1} parent=5 // pred_check_branch
      %166 = sbr.rel (%p163) target = $region36
    $region35: #{conv2d_block.1} parent=5 // pred_region
      %s167 = ssub.s32 %s10, 1
      %p168 = scmp.lt.s32.totalorder %s15, 1
      %s169 = scalar_select %p168, %s15, 1
      %s170 = smul.addr %s169, 4
      %s171 = smul.addr %s170, 8
      %s172 = scalar_lea.vmem %s0, %s171
      %p173 = pneg %p36
      %p174 = pneg %p33
      %p175 = pneg %p57
      %p176 = pneg %p54
      %p177 = pneg %p78
      %p178 = pneg %p75
      %p179 = pneg %p99
      %p180 = pneg %p96
      %p181 = pneg %p125
      %p182 = pneg %p122
      %p183 = scmp.lt.s32.totalorder %s15, 1
      %s184 = scalar_select %p183, %s15, 1
      %s185 = smul.addr %s184, 8
      %s186 = smul.addr %s185, 8
      %s187 = scalar_lea.vmem %s4, %s186
      %p188 = scmp.lt.s32.totalorder %s15, 1
      %s189 = scalar_select %p188, %s15, 1
      %s190 = smul.addr %s189, 4
      %s191 = smul.addr %s190, 8
      %s192 = scalar_lea.vmem %s0, %s191
      %p193 = scmp.lt.s32.totalorder %s15, 1
      %s194 = scalar_select %p193, %s15, 1
      %s195 = smul.addr %s194, 8
      %s196 = smul.addr %s195, 8
      %s197 = scalar_lea.vmem %s4, %s196
      %v198 = vld [vmem:[%s192] sm:$0xff]
      %v199 = vld [vmem:[%s192 + $0x8] sm:$0xff]
      %v200 = vld [vmem:[%s192 + $0x10] sm:$0xff]
      %v201 = vld [vmem:[%s192 + $0x18] sm:$0xff]
      %202 = vrot.lane.b32.xlu0 %v198, 17
      %v203 = vpop.permute.xlu0 %202
      %204 = vrot.lane.b32.xlu0 %v200, 17
      %v205 = vpop.permute.xlu0 %204
      %206 = vrot.lane.b32.xlu0 %v199, 17
      %v207 = vpop.permute.xlu0 %206
      %208 = vrot.lane.b32.xlu0 %v201, 17
      %v209 = vpop.permute.xlu0 %208
      %v210 = vlaneseq
      %v211 = vand.u32 %v210, 127
      %vm212 = vcmp.lt.s32.totalorder %v211, 17
      %v213 = vsel %vm212, %v203, %v207
      %v214 = vsel %vm212, %v205, %v209
      %v215 = vsel %vm212, %v207, %v203
      %v216 = vsel %vm212, %v209, %v205
      %217 = vrot.lane.b32.xlu0 %v198, 16
      %v218 = vpop.permute.xlu0 %217
      %219 = vrot.lane.b32.xlu0 %v200, 16
      %v220 = vpop.permute.xlu0 %219
      %221 = vrot.lane.b32.xlu0 %v199, 16
      %v222 = vpop.permute.xlu0 %221
      %223 = vrot.lane.b32.xlu0 %v201, 16
      %v224 = vpop.permute.xlu0 %223
      %vm225 = vcmp.lt.s32.totalorder %v211, 16
      %v226 = vsel %vm225, %v218, %v222
      %v227 = vsel %vm225, %v220, %v224
      %v228 = vsel %vm225, %v222, %v218
      %v229 = vsel %vm225, %v224, %v220
      %230 = vrot.lane.b32.xlu0 %v198, 15
      %v231 = vpop.permute.xlu0 %230
      %232 = vrot.lane.b32.xlu0 %v200, 15
      %v233 = vpop.permute.xlu0 %232
      %234 = vrot.lane.b32.xlu0 %v199, 15
      %v235 = vpop.permute.xlu0 %234
      %236 = vrot.lane.b32.xlu0 %v201, 15
      %v237 = vpop.permute.xlu0 %236
      %vm238 = vcmp.lt.s32.totalorder %v211, 15
      %v239 = vsel %vm238, %v231, %v235
      %v240 = vsel %vm238, %v233, %v237
      %v241 = vsel %vm238, %v235, %v231
      %v242 = vsel %vm238, %v237, %v233
      %243 = vrot.lane.b32.xlu0 %v198, 1
      %v244 = vpop.permute.xlu0 %243
      %245 = vrot.lane.b32.xlu0 %v200, 1
      %v246 = vpop.permute.xlu0 %245
      %247 = vrot.lane.b32.xlu0 %v199, 1
      %v248 = vpop.permute.xlu0 %247
      %249 = vrot.lane.b32.xlu0 %v201, 1
      %v250 = vpop.permute.xlu0 %249
      %vm251 = vcmp.lt.s32.totalorder %v211, 1
      %v252 = vsel %vm251, %v244, %v248
      %v253 = vsel %vm251, %v246, %v250
      %v254 = vsel %vm251, %v248, %v244
      %v255 = vsel %vm251, %v250, %v246
      %256 = vrot.lane.b32.xlu0 %v198, 127
      %v257 = vpop.permute.xlu0 %256
      %258 = vrot.lane.b32.xlu0 %v200, 127
      %v259 = vpop.permute.xlu0 %258
      %260 = vrot.lane.b32.xlu0 %v199, 127
      %v261 = vpop.permute.xlu0 %260
      %262 = vrot.lane.b32.xlu0 %v201, 127
      %v263 = vpop.permute.xlu0 %262
      %vm264 = vcmp.lt.s32.totalorder %v211, 127
      %v265 = vsel %vm264, %v257, %v261
      %v266 = vsel %vm264, %v259, %v263
      %v267 = vsel %vm264, %v261, %v257
      %v268 = vsel %vm264, %v263, %v259
      %269 = vrot.lane.b32.xlu0 %v198, 113
      %v270 = vpop.permute.xlu0 %269
      %271 = vrot.lane.b32.xlu0 %v200, 113
      %v272 = vpop.permute.xlu0 %271
      %273 = vrot.lane.b32.xlu0 %v199, 113
      %v274 = vpop.permute.xlu0 %273
      %275 = vrot.lane.b32.xlu0 %v201, 113
      %v276 = vpop.permute.xlu0 %275
      %vm277 = vcmp.lt.s32.totalorder %v211, 113
      %v278 = vsel %vm277, %v270, %v274
      %v279 = vsel %vm277, %v272, %v276
      %v280 = vsel %vm277, %v274, %v270
      %v281 = vsel %vm277, %v276, %v272
      %282 = vrot.lane.b32.xlu0 %v198, 112
      %v283 = vpop.permute.xlu0 %282
      %284 = vrot.lane.b32.xlu0 %v200, 112
      %v285 = vpop.permute.xlu0 %284
      %286 = vrot.lane.b32.xlu0 %v199, 112
      %v287 = vpop.permute.xlu0 %286
      %288 = vrot.lane.b32.xlu0 %v201, 112
      %v289 = vpop.permute.xlu0 %288
      %vm290 = vcmp.lt.s32.totalorder %v211, 112
      %v291 = vsel %vm290, %v283, %v287
      %v292 = vsel %vm290, %v285, %v289
      %v293 = vsel %vm290, %v287, %v283
      %v294 = vsel %vm290, %v289, %v285
      %295 = vrot.lane.b32.xlu0 %v198, 111
      %v296 = vpop.permute.xlu0 %295
      %297 = vrot.lane.b32.xlu0 %v200, 111
      %v298 = vpop.permute.xlu0 %297
      %299 = vrot.lane.b32.xlu0 %v199, 111
      %v300 = vpop.permute.xlu0 %299
      %301 = vrot.lane.b32.xlu0 %v201, 111
      %v302 = vpop.permute.xlu0 %301
      %vm303 = vcmp.lt.s32.totalorder %v211, 111
      %v304 = vsel %vm303, %v296, %v300
      %v305 = vsel %vm303, %v298, %v302
      %v306 = vsel %vm303, %v300, %v296
      %v307 = vsel %vm303, %v302, %v298
      %v308 = vld [vmem:[%s3] sm:$0xff]
      %v309 = vld [vmem:[%s3 + $0x8] sm:$0xff]
      %v310 = vld [vmem:[%s3 + $0x10] sm:$0xff]
      %v311 = vld [vmem:[%s3 + $0x18] sm:$0xff]
      %v312 = vld [vmem:[%s3 + $0x20] sm:$0xff]
      %v313 = vld [vmem:[%s3 + $0x28] sm:$0xff]
      %v314 = vld [vmem:[%s3 + $0x30] sm:$0xff]
      %v315 = vld [vmem:[%s3 + $0x38] sm:$0xff]
      %v316 = vld [vmem:[%s3 + $0x40] sm:$0xff]
      %v317 = vld [vmem:[%s3 + $0x48] sm:$0xff]
      %v318 = vld [vmem:[%s3 + $0x50] sm:$0xff]
      %v319 = vld [vmem:[%s3 + $0x58] sm:$0xff]
      %v320 = vld [vmem:[%s3 + $0x60] sm:$0xff]
      %v321 = vld [vmem:[%s3 + $0x68] sm:$0xff]
      %v322 = vld [vmem:[%s3 + $0x70] sm:$0xff]
      %v323 = vld [vmem:[%s3 + $0x78] sm:$0xff]
      %v324 = vld [vmem:[%s3 + $0x80] sm:$0xff]
      %v325 = vld [vmem:[%s3 + $0x88] sm:$0xff]
      %v326 = vld [vmem:[%s3 + $0x90] sm:$0xff]
      %v327 = vld [vmem:[%s3 + $0x98] sm:$0xff]
      %v328 = vld [vmem:[%s3 + $0xa0] sm:$0xff]
      %v329 = vld [vmem:[%s3 + $0xa8] sm:$0xff]
      %v330 = vld [vmem:[%s3 + $0xb0] sm:$0xff]
      %v331 = vld [vmem:[%s3 + $0xb8] sm:$0xff]
      %v332 = vld [vmem:[%s3 + $0xc0] sm:$0xff]
      %v333 = vld [vmem:[%s3 + $0xc8] sm:$0xff]
      %v334 = vld [vmem:[%s3 + $0xd0] sm:$0xff]
      %v335 = vld [vmem:[%s3 + $0xd8] sm:$0xff]
      %v336 = vld [vmem:[%s3 + $0xe0] sm:$0xff]
      %v337 = vld [vmem:[%s3 + $0xe8] sm:$0xff]
      %v338 = vld [vmem:[%s3 + $0xf0] sm:$0xff]
      %v339 = vld [vmem:[%s3 + $0xf8] sm:$0xff]
      %v340 = vld [vmem:[%s3 + $0x100] sm:$0xff]
      %v341 = vld [vmem:[%s3 + $0x108] sm:$0xff]
      %v342 = vld [vmem:[%s3 + $0x110] sm:$0xff]
      %v343 = vld [vmem:[%s3 + $0x118] sm:$0xff]
      %v344 = vmul.f32 %v215, %v308
      %v345 = vmul.f32 %v213, %v309
      %v346 = vmul.f32 %v216, %v310
      %v347 = vmul.f32 %v214, %v311
      %v348 = vmul.f32 %v228, %v312
      %v349 = vmul.f32 %v226, %v313
      %v350 = vmul.f32 %v229, %v314
      %v351 = vmul.f32 %v227, %v315
      %v352 = vmul.f32 %v241, %v316
      %v353 = vmul.f32 %v239, %v317
      %v354 = vmul.f32 %v242, %v318
      %v355 = vmul.f32 %v240, %v319
      %v356 = vmul.f32 %v254, %v320
      %v357 = vmul.f32 %v252, %v321
      %v358 = vmul.f32 %v255, %v322
      %v359 = vmul.f32 %v253, %v323
      %v360 = vmul.f32 %v198, %v324
      %v361 = vmul.f32 %v199, %v325
      %v362 = vmul.f32 %v200, %v326
      %v363 = vmul.f32 %v201, %v327
      %v364 = vmul.f32 %v265, %v328
      %v365 = vmul.f32 %v267, %v329
      %v366 = vmul.f32 %v266, %v330
      %v367 = vmul.f32 %v268, %v331
      %v368 = vmul.f32 %v278, %v332
      %v369 = vmul.f32 %v280, %v333
      %v370 = vmul.f32 %v279, %v334
      %v371 = vmul.f32 %v281, %v335
      %v372 = vmul.f32 %v291, %v336
      %v373 = vmul.f32 %v293, %v337
      %v374 = vmul.f32 %v292, %v338
      %v375 = vmul.f32 %v294, %v339
      %v376 = vmul.f32 %v304, %v340
      %v377 = vmul.f32 %v306, %v341
      %v378 = vmul.f32 %v305, %v342
      %v379 = vmul.f32 %v307, %v343
      %v380 = vld [vmem:[%s1] sm:$0xff]
      %v381 = vld [vmem:[%s1 + $0x8] sm:$0xff]
      %v382 = vld [vmem:[%s1 + $0x10] sm:$0xff]
      %v383 = vld [vmem:[%s1 + $0x18] sm:$0xff]
      %v384 = vld [vmem:[%s1 + $0x20] sm:$0xff]
      %v385 = vld [vmem:[%s1 + $0x28] sm:$0xff]
      %v386 = vld [vmem:[%s1 + $0x30] sm:$0xff]
      %v387 = vld [vmem:[%s1 + $0x38] sm:$0xff]
      %v388 = vld [vmem:[%s2] sm:$0xff]
      %v389 = vld [vmem:[%s2 + $0x8] sm:$0xff]
      %v390 = vld [vmem:[%s2 + $0x10] sm:$0xff]
      %v391 = vld [vmem:[%s2 + $0x18] sm:$0xff]
      %393 = vset.pattern.permute.xlu0 0
      %394 = vperm.xlu0 %393, %v388
      %v395 = vpop.permute.xlu0 %394
      %398 = vset.pattern.permute.xlu0 0
      %399 = vperm.xlu0 %398, %v389
      %v400 = vpop.permute.xlu0 %399
      %403 = vset.pattern.permute.xlu0 0
      %404 = vperm.xlu0 %403, %v390
      %v405 = vpop.permute.xlu0 %404
      %408 = vset.pattern.permute.xlu0 0
      %409 = vperm.xlu0 %408, %v391
      %v410 = vpop.permute.xlu0 %409
      %vm412 = vcmask 130048
      %v414 = vsel %vm412, %v381, 0
      %v417 = vsel %vm412, %v383, 0
      %v420 = vsel %vm412, %v385, 0
      %v423 = vsel %vm412, %v387, 0
      %425 = vmatprep.subr.mxu0 %v375
      %426 = vmatpush1.msra.mxu0 %v374
      %427 = vmatprep.subr.mxu0 %v373
      %428 = vmatpush1.msra.mxu0 %v372
      %429 = vmatprep.subr.mxu0 %v371
      %430 = vmatpush1.msra.mxu0 %v370
      %431 = vmatprep.subr.mxu0 %v369
      %432 = vmatpush1.msra.mxu0 %v368
      %433 = vmatprep.subr.mxu0 %v367
      %434 = vmatpush1.msra.mxu0 %v366
      %435 = vmatprep.subr.mxu0 %v365
      %436 = vmatpush1.msra.mxu0 %v364
      %437 = vmatprep.subr.mxu0 %v363
      %438 = vmatpush1.msra.mxu0 %v362
      %439 = vmatprep.subr.mxu0 %v361
      %440 = vmatpush1.msra.mxu0 %v360
      %441 = vmatprep.subr.mxu0 %v359
      %442 = vmatpush1.msra.mxu0 %v358
      %443 = vmatprep.subr.mxu0 %v357
      %444 = vmatpush1.msra.mxu0 %v356
      %445 = vmatprep.subr.mxu0 %v355
      %446 = vmatpush1.msra.mxu0 %v354
      %447 = vmatprep.subr.mxu0 %v353
      %448 = vmatpush1.msra.mxu0 %v352
      %449 = vmatprep.subr.mxu0 %v351
      %450 = vmatpush1.msra.mxu0 %v350
      %451 = vmatprep.subr.mxu0 %v349
      %452 = vmatpush1.msra.mxu0 %v348
      %453 = vmatprep.subr.mxu0 %v347
      %454 = vmatpush1.msra.mxu0 %v346
      %455 = vmatprep.subr.mxu0 %v345
      %456 = vmatpush1.msra.mxu0 %v344
      %457 = vmatprep.subr.mxu0 0.0
      %458 = vmatpush2.msra.mxu0 0.0
      %459 = vmatprep.subr.mxu0 0.0
      %460 = vmatpush2.msra.mxu0 0.0
      %461 = vmatprep.subr.mxu0 0.0
      %462 = vmatpush2.msra.mxu0 0.0
      %463 = vmatprep.subr.mxu0 0.0
      %464 = vmatpush2.msra.mxu0 0.0
      %465 = vmatprep.subr.mxu0 0.0
      %466 = vmatpush2.msra.mxu0 0.0
      %467 = vmatprep.subr.mxu0 0.0
      %468 = vmatpush2.msra.mxu0 0.0
      %469 = vmatprep.subr.mxu0 0.0
      %470 = vmatpush2.msra.mxu0 0.0
      %471 = vmatprep.subr.mxu0 0.0
      %472 = vmatpush2.msra.mxu0 0.0
      %473 = vmatprep.subr.mxu0 0.0
      %474 = vmatpush2.msra.mxu0 0.0
      %475 = vmatprep.subr.mxu0 0.0
      %476 = vmatpush2.msra.mxu0 0.0
      %477 = vmatprep.subr.mxu0 0.0
      %478 = vmatpush2.msra.mxu0 0.0
      %479 = vmatprep.subr.mxu0 0.0
      %480 = vmatpush2.msra.mxu0 0.0
      %481 = vmatprep.subr.mxu0 0.0
      %482 = vmatpush2.msra.mxu0 0.0
      %483 = vmatprep.subr.mxu0 0.0
      %484 = vmatpush2.msra.mxu0 0.0
      %485 = vmatprep.subr.mxu0 %v379
      %486 = vmatpush2.msra.mxu0 %v378
      %487 = vmatprep.subr.mxu0 %v377
      %488 = vmatpush2.msra.mxu0 %v376
      %489 = vmatprep.mubr.f32.mxu0 %v414
      %490 = vmatmul.mubr.f32.gmra.mxu0 %v380
      %v491 = vpop.f32.mrf.mxu0
      %v492 = vadd.f32 %v395, %v491
      %v493 = vpop.f32.mrf.mxu0
      %v494 = vadd.f32 %v395, %v493
      %495 = vmatprep.mubr.f32.mxu0 %v417
      %496 = vmatmul.mubr.f32.gmra.mxu0 %v382
      %v497 = vpop.f32.mrf.mxu0
      %v498 = vadd.f32 %v400, %v497
      %v499 = vpop.f32.mrf.mxu0
      %v500 = vadd.f32 %v400, %v499
      %501 = vmatprep.mubr.f32.mxu0 %v420
      %502 = vmatmul.mubr.f32.gmra.mxu0 %v384
      %v503 = vpop.f32.mrf.mxu0
      %v504 = vadd.f32 %v405, %v503
      %v505 = vpop.f32.mrf.mxu0
      %v506 = vadd.f32 %v405, %v505
      %507 = vmatprep.mubr.f32.mxu0 %v423
      %508 = vmatmul.mubr.f32.gmra.mxu0 %v386
      %v509 = vpop.f32.mrf.mxu0
      %v510 = vadd.f32 %v410, %v509
      %v511 = vpop.f32.mrf.mxu0
      %v512 = vadd.f32 %v410, %v511
      %513 = vdwg.mxu0
      %vm514 = vcmp.gt.f32.partialorder %v492, 0.0
      %vm515 = vcmp.gt.f32.partialorder %v494, 0.0
      %vm516 = vcmp.gt.f32.partialorder %v498, 0.0
      %vm517 = vcmp.gt.f32.partialorder %v500, 0.0
      %vm518 = vcmp.gt.f32.partialorder %v504, 0.0
      %vm519 = vcmp.gt.f32.partialorder %v506, 0.0
      %vm520 = vcmp.gt.f32.partialorder %v510, 0.0
      %vm521 = vcmp.gt.f32.partialorder %v512, 0.0
      %v522 = vmin.f32 %v492, 0.0
      %v523 = vmin.f32 %v494, 0.0
      %v524 = vmin.f32 %v498, 0.0
      %v525 = vmin.f32 %v500, 0.0
      %v526 = vmin.f32 %v504, 0.0
      %v527 = vmin.f32 %v506, 0.0
      %v528 = vmin.f32 %v510, 0.0
      %v529 = vmin.f32 %v512, 0.0
      %v530 = vmul.f32 %v522, 1.442695
      %v531 = vpow.pop %v530
      %v532 = vmul.f32 %v523, 1.442695
      %v533 = vpow.pop %v532
      %v534 = vmul.f32 %v524, 1.442695
      %v535 = vpow.pop %v534
      %v536 = vmul.f32 %v525, 1.442695
      %v537 = vpow.pop %v536
      %v538 = vmul.f32 %v526, 1.442695
      %v539 = vpow.pop %v538
      %v540 = vmul.f32 %v527, 1.442695
      %v541 = vpow.pop %v540
      %v542 = vmul.f32 %v528, 1.442695
      %v543 = vpow.pop %v542
      %v544 = vmul.f32 %v529, 1.442695
      %v545 = vpow.pop %v544
      %v546 = vsub.f32 %v531, 1.0
      %v547 = vsub.f32 %v533, 1.0
      %v548 = vsub.f32 %v535, 1.0
      %v549 = vsub.f32 %v537, 1.0
      %v550 = vsub.f32 %v539, 1.0
      %v551 = vsub.f32 %v541, 1.0
      %v552 = vsub.f32 %v543, 1.0
      %v553 = vsub.f32 %v545, 1.0
      %v554 = vsel %vm514, %v492, %v546
      %v555 = vsel %vm515, %v494, %v547
      %v556 = vsel %vm516, %v498, %v548
      %v557 = vsel %vm517, %v500, %v549
      %v558 = vsel %vm518, %v504, %v550
      %v559 = vsel %vm519, %v506, %v551
      %v560 = vsel %vm520, %v510, %v552
      %v561 = vsel %vm521, %v512, %v553
      %v562 = vadd.f32 %v554, %v555
      %563 = vadd.xlane.f32.xlu0 %v562
      %v564 = vpop.xlane.xlu0 %563
      %v565 = vadd.f32 %v556, %v557
      %566 = vadd.xlane.f32.xlu0 %v565
      %v567 = vpop.xlane.xlu0 %566
      %v568 = vadd.f32 %v558, %v559
      %569 = vadd.xlane.f32.xlu0 %v568
      %v570 = vpop.xlane.xlu0 %569
      %v571 = vadd.f32 %v560, %v561
      %572 = vadd.xlane.f32.xlu0 %v571
      %v573 = vpop.xlane.xlu0 %572
      %v574 = vrcp.pop 256.0
      %v575 = vmul.f32 %v564, %v574
      %v576 = vmul.f32 %v567, %v574
      %v577 = vmul.f32 %v570, %v574
      %v578 = vmul.f32 %v573, %v574
      %v579 = vsub.f32 %v554, %v575
      %v580 = vsub.f32 %v555, %v575
      %v581 = vsub.f32 %v556, %v576
      %v582 = vsub.f32 %v557, %v576
      %v583 = vsub.f32 %v558, %v577
      %v584 = vsub.f32 %v559, %v577
      %v585 = vsub.f32 %v560, %v578
      %v586 = vsub.f32 %v561, %v578
      %v587 = vmul.f32 %v579, %v579
      %v588 = vmul.f32 %v580, %v580
      %v589 = vmul.f32 %v581, %v581
      %v590 = vmul.f32 %v582, %v582
      %v591 = vmul.f32 %v583, %v583
      %v592 = vmul.f32 %v584, %v584
      %v593 = vmul.f32 %v585, %v585
      %v594 = vmul.f32 %v586, %v586
      %v595 = vadd.f32 %v587, %v588
      %596 = vadd.xlane.f32.xlu0 %v595
      %v597 = vpop.xlane.xlu0 %596
      %v598 = vadd.f32 %v589, %v590
      %599 = vadd.xlane.f32.xlu0 %v598
      %v600 = vpop.xlane.xlu0 %599
      %v601 = vadd.f32 %v591, %v592
      %602 = vadd.xlane.f32.xlu0 %v601
      %v603 = vpop.xlane.xlu0 %602
      %v604 = vadd.f32 %v593, %v594
      %605 = vadd.xlane.f32.xlu0 %v604
      %v606 = vpop.xlane.xlu0 %605
      %v607 = vmul.f32 %v597, %v574
      %v608 = vmul.f32 %v600, %v574
      %v609 = vmul.f32 %v603, %v574
      %v610 = vmul.f32 %v606, %v574
      %v611 = vadd.f32 %v607, 1e-05
      %v612 = vadd.f32 %v608, 1e-05
      %v613 = vadd.f32 %v609, 1e-05
      %v614 = vadd.f32 %v610, 1e-05
      %v615 = vrsqrt.pop %v611
      %v616 = vrsqrt.pop %v612
      %v617 = vrsqrt.pop %v613
      %v618 = vrsqrt.pop %v614
      %v619 = vmul.f32 %v579, %v615
      %v620 = vmul.f32 %v580, %v615
      %v621 = vmul.f32 %v581, %v616
      %v622 = vmul.f32 %v582, %v616
      %v623 = vmul.f32 %v583, %v617
      %v624 = vmul.f32 %v584, %v617
      %v625 = vmul.f32 %v585, %v618
      %v626 = vmul.f32 %v586, %v618
      %627 = vst [vmem:[%s197] sm:$0xff] %v619
      %628 = vst [vmem:[%s197 + $0x8] sm:$0xff] %v620
      %629 = vst [vmem:[%s197 + $0x10] sm:$0xff] %v621
      %630 = vst [vmem:[%s197 + $0x18] sm:$0xff] %v622
      %631 = vst [vmem:[%s197 + $0x20] sm:$0xff] %v623
      %632 = vst [vmem:[%s197 + $0x28] sm:$0xff] %v624
      %633 = vst [vmem:[%s197 + $0x30] sm:$0xff] %v625
      %634 = vst [vmem:[%s197 + $0x38] sm:$0xff] %v626
      %p635 = scmp.lt.s32.totalorder %s15, 1
      %s636 = scalar_select %p635, %s15, 1
      %s637 = smul.addr %s636, 8
      %s638 = smul.addr %s637, 8
      %s639 = scalar_lea.vmem %s4, %s638
      // Predicated region
      $region37: #{conv2d_block.1} parent=35 // pred_check
        %p640 = pneg %p122
      $region38: #{conv2d_block.1} parent=35 // pred_check_branch
        %642 = sbr.rel (%p640) target = $region40
      $region39: #{conv2d_block.1} parent=35 // pred_region
        _
      $region40: #{conv2d_block.1} parent=35 // pred_fallthru
        _
    $region36: #{conv2d_block.1} parent=5 // pred_fallthru
      _
    %p643 = scmp.le.s32.totalorder 2, %s10
    // Predicated region
    $region41: #{conv2d_block.1} parent=5 // pred_check
      %p644 = pneg %p643
    $region42: #{conv2d_block.1} parent=5 // pred_check_branch
      %646 = sbr.rel (%p644) target = $region44
    $region43: #{conv2d_block.1} parent=5 // pred_region
      %s647 = ssub.s32 %s10, 2
      // Predicated region
      $region45: #{conv2d_block.1} parent=43 // pred_check
        %p648 = pneg %p128
      $region46: #{conv2d_block.1} parent=43 // pred_check_branch
        %650 = sbr.rel (%p648) target = $region48
      $region47: #{conv2d_block.1} parent=43 // pred_region
        %p651 = scmp.lt.s32.totalorder %s16, 1
        %s652 = scalar_select %p651, %s16, 1
        %s653 = smul.addr %s652, 8
        %s654 = smul.addr %s653, 8
        %s655 = scalar_lea.vmem %s4, %s654
      $region48: #{conv2d_block.1} parent=43 // pred_fallthru
        _
    $region44: #{conv2d_block.1} parent=5 // pred_fallthru
      _
  $region6: #{conv2d_block.1} parent=0 // loop_footer
    %s14 = sadd.s32 1, %s10
  $region7: #{conv2d_block.1} parent=0 // loop_footer_branch
    %9 = sbr.rel target = $region3
  $region8: #{conv2d_block.1} parent=0 // loop_exit
    _

</llo_original>
